<compile_context>
chip_gen: v6e
topology: v6e:2x2x1
jax: 0.10.0
libtpu: 0.0.40
codegen_flags: <defaults>
</compile_context>

<pallas_src>
import functools

import jax
import jax.numpy as jnp
from jax.experimental import pallas as pl
from jax.experimental.pallas import tpu as pltpu


def _conv_bn_relu_kernel(x_ref, w_ref, scale_ref, shift_ref, o_ref, patch_ref,
                         *, KH, KW, Wp, dilation, apply_relu, compute_dtype):
    """Fused conv + BN(eval) + optional ReLU for one image / one Cout tile.

    x_ref:     (Cin, FLAT)        padded image, spatially flattened (row stride Wp)
    w_ref:     (tCout, KH*KW*Cin) im2col-ordered weights (compute_dtype)
    scale_ref: (tCout, 1) f32     folded BN scale  (gamma / sqrt(var + eps))
    shift_ref: (tCout, 1) f32     folded BN shift  (beta + (bias - mean) * scale)
    o_ref:     (tCout, L)         L = Ho*Wp "wide" output; cols [Wo, Wp) are junk
    patch_ref: (KH*KW*Cin, L) f32 VMEM im2col scratch; persists across Cout tiles
    """
    Cin = x_ref.shape[0]
    L = o_ref.shape[-1]

    # Build the im2col scratch once per image (first Cout tile only).  Every
    # tap is a static contiguous lane slice of the flattened padded image.
    @pl.when(pl.program_id(1) == 0)
    def _build_patches():
        for kh in range(KH):
            for kw in range(KW):
                t = kh * KW + kw
                off = dilation * (kh * Wp + kw)
                patch_ref[t * Cin:(t + 1) * Cin, :] = x_ref[:, off:off + L]

    patches = patch_ref[...].astype(compute_dtype)            # (K, L) bf16
    acc = jnp.dot(w_ref[...], patches,
                  preferred_element_type=jnp.float32)          # (tCout, L) on MXU

    y = acc * scale_ref[...] + shift_ref[...]                  # fused BN epilogue
    if apply_relu:
        y = jnp.maximum(y, 0.0)
    o_ref[...] = y.astype(o_ref.dtype)


def basic_conv(x_nchw, w_oihw, gamma=None, beta=None, running_mean=None,
               running_var=None, conv_bias=None, *, stride=1, padding=0,
               dilation=1, groups=1, eps=1e-5, relu=True, bn=True,
               compute_dtype=jnp.bfloat16):
    """BasicConv forward. x_nchw: (N, Cin, H, W) -> (N, Cout, Ho, Wo), NCHW."""
    N, Cin, H, W = x_nchw.shape
    Cout, Cin_w, KH, KW = w_oihw.shape
    if stride != 1 or groups != 1:
        # TODO(synk): stride>1 / grouped convs need a different gather pattern
        # (pre-strided DMA); not implemented in this kernel.
        raise NotImplementedError("Pallas BasicConv kernel supports stride=1, groups=1")
    assert Cin_w == Cin

    Hp = H + 2 * padding
    Wp = W + 2 * padding
    Ho = Hp - dilation * (KH - 1)
    Wo = Wp - dilation * (KW - 1)
    assert Ho > 0 and Wo > 0

    # Tail rows of zeros so the widest tap's contiguous slice stays in bounds.
    tail = dilation * (KW - 1)
    extra_rows = -(-tail // Wp) if tail else 0
    FLAT = (Hp + extra_rows) * Wp
    L = Ho * Wp                      # "wide" output length (padded-width rows)
    KK = KH * KW * Cin

    # ---- wrapper glue: zero-pad + free reshape (no transposes) ----
    x_flat = jnp.pad(
        x_nchw,
        ((0, 0), (0, 0), (padding, padding + extra_rows), (padding, padding)),
    ).reshape(N, Cin, FLAT)

    # im2col-ordered weights: (Cout, KH, KW, Cin) -> (Cout, KH*KW*Cin), bf16.
    w2 = jnp.transpose(w_oihw, (0, 2, 3, 1)).reshape(Cout, KK).astype(compute_dtype)

    # ---- fold BatchNorm (eval mode) + optional conv bias into scale/shift ----
    cb = conv_bias if conv_bias is not None else jnp.zeros((Cout,), jnp.float32)
    if bn:
        scale = gamma / jnp.sqrt(running_var + eps)
        shift = beta + (cb - running_mean) * scale
    else:
        scale = jnp.ones((Cout,), jnp.float32)
        shift = cb
    scale = scale.reshape(Cout, 1).astype(jnp.float32)
    shift = shift.reshape(Cout, 1).astype(jnp.float32)

    # Cout tiling (second grid axis); trivially one tile for small Cout.
    if Cout <= 256 or Cout % 128 != 0:
        t_cout = Cout
    else:
        t_cout = 128
    n_cout_tiles = Cout // t_cout

    kernel = functools.partial(
        _conv_bn_relu_kernel, KH=KH, KW=KW, Wp=Wp, dilation=dilation,
        apply_relu=relu, compute_dtype=compute_dtype)

    itemsize = jnp.dtype(x_nchw.dtype).itemsize
    est_vmem = (2 * Cin * FLAT * itemsize                         # input block x2 (pipeline)
                + 2 * t_cout * KK * jnp.dtype(compute_dtype).itemsize
                + 4 * t_cout * 4                                  # scale + shift
                + 2 * t_cout * L * itemsize                       # output block x2
                + KK * L * 4)                                     # im2col scratch
    vmem_limit = int(min(max(3 * est_vmem, 16 * 2**20), 64 * 2**20))

    out_wide = pl.pallas_call(
        kernel,
        out_shape=jax.ShapeDtypeStruct((N, Cout, L), x_nchw.dtype),
        grid_spec=pltpu.PrefetchScalarGridSpec(
            num_scalar_prefetch=0,
            grid=(N, n_cout_tiles),
            in_specs=[
                pl.BlockSpec((None, Cin, FLAT), lambda n, c: (n, 0, 0)),
                pl.BlockSpec((t_cout, KK), lambda n, c: (c, 0)),
                pl.BlockSpec((t_cout, 1), lambda n, c: (c, 0)),
                pl.BlockSpec((t_cout, 1), lambda n, c: (c, 0)),
            ],
            out_specs=pl.BlockSpec((None, t_cout, L), lambda n, c: (n, c, 0)),
            scratch_shapes=[pltpu.VMEM((KK, L), jnp.float32)],
        ),
        compiler_params=pltpu.CompilerParams(
            dimension_semantics=("parallel", "arbitrary"),
            vmem_limit_bytes=vmem_limit),
    )(x_flat, w2, scale, shift)

    # Crop the padded-width junk columns; result is already NCHW (a free
    # reshape + one output-sized slice instead of NHWC<->NCHW transposes).
    return out_wide.reshape(N, Cout, Ho, Wp)[:, :, :, :Wo]


def _reference(x, w, gamma, beta, running_mean, running_var, *, stride, padding,
               dilation, eps, relu, bn=True, compute_dtype=jnp.bfloat16):
    # Same operand precision as the kernel (bf16 operands, f32 accumulation).
    xr = x.astype(compute_dtype).astype(jnp.float32)
    wr = w.astype(compute_dtype).astype(jnp.float32)
    y = jax.lax.conv_general_dilated(
        xr, wr, window_strides=(stride, stride),
        padding=[(padding, padding), (padding, padding)],
        rhs_dilation=(dilation, dilation),
        dimension_numbers=("NCHW", "OIHW", "NCHW"))
    if bn:
        s = (gamma / jnp.sqrt(running_var + eps)).reshape(1, -1, 1, 1)
        b = (beta - running_mean * gamma / jnp.sqrt(running_var + eps)).reshape(1, -1, 1, 1)
        y = y * s + b
    if relu:
        y = jnp.maximum(y, 0.0)
    return y


if __name__ == "__main__":
    key = jax.random.PRNGKey(0)
    k_x, k_w = jax.random.split(key)

    # BasicConv(in_planes=4, out_planes=8, kernel_size=3, stride=1, padding=1,
    #           relu=True, bn=True, bias=False) at small shapes.
    N, Cin, H, W = 2, 4, 16, 16
    Cout, KH, KW = 8, 3, 3
    stride, padding, eps = 1, 1, 1e-5

    x = jax.random.normal(k_x, (N, Cin, H, W), dtype=jnp.float32)
    w = jax.random.normal(k_w, (Cout, Cin, KH, KW), dtype=jnp.float32) * 0.1

    gamma = 1.0 + 0.1 * jnp.arange(Cout, dtype=jnp.float32)
    beta = 0.01 * jnp.arange(Cout, dtype=jnp.float32)
    running_mean = 0.05 * jnp.arange(Cout, dtype=jnp.float32)
    running_var = 1.0 + 0.02 * jnp.arange(Cout, dtype=jnp.float32)

    # conv -> BN(eval) -> ReLU
    out = basic_conv(x, w, gamma, beta, running_mean, running_var,
                     stride=stride, padding=padding, eps=eps, relu=True, bn=True)
    out = jax.block_until_ready(out)
    ref = _reference(x, w, gamma, beta, running_mean, running_var, stride=stride,
                     padding=padding, dilation=1, eps=eps, relu=True)
    assert out.shape == (N, Cout, H, W)
    assert jnp.allclose(out, ref, atol=2e-3, rtol=2e-3), "conv+bn+relu mismatch"

    # relu=False path (previously silently applied ReLU anyway).
    out_nr = basic_conv(x, w, gamma, beta, running_mean, running_var,
                        stride=stride, padding=padding, eps=eps, relu=False, bn=True)
    out_nr = jax.block_until_ready(out_nr)
    ref_nr = _reference(x, w, gamma, beta, running_mean, running_var, stride=stride,
                        padding=padding, dilation=1, eps=eps, relu=False)
    assert jnp.allclose(out_nr, ref_nr, atol=2e-3, rtol=2e-3), "conv+bn mismatch"

    print("KERNEL_OK")
</pallas_src>

<mosaic_0001>
module attributes {stable_mosaic.version = 11 : i64} {
  func.func @_conv_bn_relu_kernel(%arg0: i32, %arg1: i32, %arg2: memref<1x4x342xf32, #tpu.memory_space<vmem>>, %arg3: memref<8x36xbf16, #tpu.memory_space<vmem>>, %arg4: memref<8x1xf32, #tpu.memory_space<vmem>>, %arg5: memref<8x1xf32, #tpu.memory_space<vmem>>, %arg6: memref<1x8x288xf32, #tpu.memory_space<vmem>>, %arg7: memref<36x288xf32, #tpu.memory_space<vmem>>) attributes {dimension_semantics = [#tpu.dimension_semantics<parallel>, #tpu.dimension_semantics<arbitrary>], iteration_bounds = array<i64: 2, 1>, scalar_prefetch = 0 : i64, scratch_operands = 1 : i64, tpu.core_type = #tpu.core_type<tc>, window_params = [{transform_indices = @transform_0, window_bounds = array<i64: 1, 4, 342>}, {transform_indices = @transform_1, window_bounds = array<i64: 8, 36>}, {transform_indices = @transform_2, window_bounds = array<i64: 8, 1>}, {transform_indices = @transform_3, window_bounds = array<i64: 8, 1>}, {transform_indices = @transform_4, window_bounds = array<i64: 1, 8, 288>}]} {
    %c0_i32 = arith.constant 0 : i32
    %0 = arith.cmpi eq, %arg1, %c0_i32 : i32
    %1 = arith.extui %0 : i1 to i32
    %c0_i32_0 = arith.constant 0 : i32
    %2 = arith.cmpi ne, %1, %c0_i32_0 : i32
    scf.if %2 {
      %c0_12 = arith.constant 0 : index
      %c0_13 = arith.constant 0 : index
      %c0_14 = arith.constant 0 : index
      %18 = vector.load %arg2[%c0_12, %c0_13, %c0_14] : memref<1x4x342xf32, #tpu.memory_space<vmem>>, vector<1x4x288xf32>
      %19 = vector.shape_cast %18 : vector<1x4x288xf32> to vector<4x288xf32>
      %c0_15 = arith.constant 0 : index
      %c0_16 = arith.constant 0 : index
      %20 = vector.load %arg7[%c0_15, %c0_16] : memref<36x288xf32, #tpu.memory_space<vmem>>, vector<4x288xf32>
      tpu.vector_store %arg7[%c0_15, %c0_16], %19 {strides = array<i32>} : memref<36x288xf32, #tpu.memory_space<vmem>>, vector<4x288xf32>,
      %c0_17 = arith.constant 0 : index
      %c0_18 = arith.constant 0 : index
      %c1 = arith.constant 1 : index
      %21 = vector.load %arg2[%c0_17, %c0_18, %c1] : memref<1x4x342xf32, #tpu.memory_space<vmem>>, vector<1x4x288xf32>
      %22 = vector.shape_cast %21 : vector<1x4x288xf32> to vector<4x288xf32>
      %c4 = arith.constant 4 : index
      %c0_19 = arith.constant 0 : index
      %23 = vector.load %arg7[%c4, %c0_19] : memref<36x288xf32, #tpu.memory_space<vmem>>, vector<4x288xf32>
      tpu.vector_store %arg7[%c4, %c0_19], %22 {strides = array<i32>} : memref<36x288xf32, #tpu.memory_space<vmem>>, vector<4x288xf32>,
      %c0_20 = arith.constant 0 : index
      %c0_21 = arith.constant 0 : index
      %c2 = arith.constant 2 : index
      %24 = vector.load %arg2[%c0_20, %c0_21, %c2] : memref<1x4x342xf32, #tpu.memory_space<vmem>>, vector<1x4x288xf32>
      %25 = vector.shape_cast %24 : vector<1x4x288xf32> to vector<4x288xf32>
      %c8 = arith.constant 8 : index
      %c0_22 = arith.constant 0 : index
      %26 = vector.load %arg7[%c8, %c0_22] : memref<36x288xf32, #tpu.memory_space<vmem>>, vector<4x288xf32>
      tpu.vector_store %arg7[%c8, %c0_22], %25 {strides = array<i32>} : memref<36x288xf32, #tpu.memory_space<vmem>>, vector<4x288xf32>,
      %c0_23 = arith.constant 0 : index
      %c0_24 = arith.constant 0 : index
      %c18 = arith.constant 18 : index
      %27 = vector.load %arg2[%c0_23, %c0_24, %c18] : memref<1x4x342xf32, #tpu.memory_space<vmem>>, vector<1x4x288xf32>
      %28 = vector.shape_cast %27 : vector<1x4x288xf32> to vector<4x288xf32>
      %c12 = arith.constant 12 : index
      %c0_25 = arith.constant 0 : index
      %29 = vector.load %arg7[%c12, %c0_25] : memref<36x288xf32, #tpu.memory_space<vmem>>, vector<4x288xf32>
      tpu.vector_store %arg7[%c12, %c0_25], %28 {strides = array<i32>} : memref<36x288xf32, #tpu.memory_space<vmem>>, vector<4x288xf32>,
      %c0_26 = arith.constant 0 : index
      %c0_27 = arith.constant 0 : index
      %c19 = arith.constant 19 : index
      %30 = vector.load %arg2[%c0_26, %c0_27, %c19] : memref<1x4x342xf32, #tpu.memory_space<vmem>>, vector<1x4x288xf32>
      %31 = vector.shape_cast %30 : vector<1x4x288xf32> to vector<4x288xf32>
      %c16 = arith.constant 16 : index
      %c0_28 = arith.constant 0 : index
      %32 = vector.load %arg7[%c16, %c0_28] : memref<36x288xf32, #tpu.memory_space<vmem>>, vector<4x288xf32>
      tpu.vector_store %arg7[%c16, %c0_28], %31 {strides = array<i32>} : memref<36x288xf32, #tpu.memory_space<vmem>>, vector<4x288xf32>,
      %c0_29 = arith.constant 0 : index
      %c0_30 = arith.constant 0 : index
      %c20 = arith.constant 20 : index
      %33 = vector.load %arg2[%c0_29, %c0_30, %c20] : memref<1x4x342xf32, #tpu.memory_space<vmem>>, vector<1x4x288xf32>
      %34 = vector.shape_cast %33 : vector<1x4x288xf32> to vector<4x288xf32>
      %c20_31 = arith.constant 20 : index
      %c0_32 = arith.constant 0 : index
      %35 = vector.load %arg7[%c20_31, %c0_32] : memref<36x288xf32, #tpu.memory_space<vmem>>, vector<4x288xf32>
      tpu.vector_store %arg7[%c20_31, %c0_32], %34 {strides = array<i32>} : memref<36x288xf32, #tpu.memory_space<vmem>>, vector<4x288xf32>,
      %c0_33 = arith.constant 0 : index
      %c0_34 = arith.constant 0 : index
      %c36 = arith.constant 36 : index
      %36 = vector.load %arg2[%c0_33, %c0_34, %c36] : memref<1x4x342xf32, #tpu.memory_space<vmem>>, vector<1x4x288xf32>
      %37 = vector.shape_cast %36 : vector<1x4x288xf32> to vector<4x288xf32>
      %c24 = arith.constant 24 : index
      %c0_35 = arith.constant 0 : index
      %38 = vector.load %arg7[%c24, %c0_35] : memref<36x288xf32, #tpu.memory_space<vmem>>, vector<4x288xf32>
      tpu.vector_store %arg7[%c24, %c0_35], %37 {strides = array<i32>} : memref<36x288xf32, #tpu.memory_space<vmem>>, vector<4x288xf32>,
      %c0_36 = arith.constant 0 : index
      %c0_37 = arith.constant 0 : index
      %c37 = arith.constant 37 : index
      %39 = vector.load %arg2[%c0_36, %c0_37, %c37] : memref<1x4x342xf32, #tpu.memory_space<vmem>>, vector<1x4x288xf32>
      %40 = vector.shape_cast %39 : vector<1x4x288xf32> to vector<4x288xf32>
      %c28 = arith.constant 28 : index
      %c0_38 = arith.constant 0 : index
      %41 = vector.load %arg7[%c28, %c0_38] : memref<36x288xf32, #tpu.memory_space<vmem>>, vector<4x288xf32>
      tpu.vector_store %arg7[%c28, %c0_38], %40 {strides = array<i32>} : memref<36x288xf32, #tpu.memory_space<vmem>>, vector<4x288xf32>,
      %c0_39 = arith.constant 0 : index
      %c0_40 = arith.constant 0 : index
      %c38 = arith.constant 38 : index
      %42 = vector.load %arg2[%c0_39, %c0_40, %c38] : memref<1x4x342xf32, #tpu.memory_space<vmem>>, vector<1x4x288xf32>
      %43 = vector.shape_cast %42 : vector<1x4x288xf32> to vector<4x288xf32>
      %c32 = arith.constant 32 : index
      %c0_41 = arith.constant 0 : index
      %44 = vector.load %arg7[%c32, %c0_41] : memref<36x288xf32, #tpu.memory_space<vmem>>, vector<4x288xf32>
      tpu.vector_store %arg7[%c32, %c0_41], %43 {strides = array<i32>} : memref<36x288xf32, #tpu.memory_space<vmem>>, vector<4x288xf32>,
    } else {
    }
    %c0 = arith.constant 0 : index
    %c0_1 = arith.constant 0 : index
    %3 = vector.load %arg7[%c0, %c0_1] : memref<36x288xf32, #tpu.memory_space<vmem>>, vector<36x288xf32>
    %4 = arith.truncf %3 : vector<36x288xf32> to vector<36x288xbf16>
    %c0_2 = arith.constant 0 : index
    %c0_3 = arith.constant 0 : index
    %5 = vector.load %arg3[%c0_2, %c0_3] : memref<8x36xbf16, #tpu.memory_space<vmem>>, vector<8x36xbf16>
    %cst = arith.constant dense<0.000000e+00> : vector<8x288xf32>
    %6 = tpu.matmul %5, %4, %cst {dimension_numbers = #tpu.dot_dimension_numbers<[1], [0], [0], [1], [0, 0, 1, 1], [], []>} : vector<8x36xbf16>, vector<36x288xbf16>, vector<8x288xf32> -> vector<8x288xf32>
    %c0_4 = arith.constant 0 : index
    %c0_5 = arith.constant 0 : index
    %7 = vector.load %arg4[%c0_4, %c0_5] : memref<8x1xf32, #tpu.memory_space<vmem>>, vector<8x1xf32>
    %8 = vector.broadcast %7 : vector<8x1xf32> to vector<8x288xf32>
    %9 = arith.mulf %6, %8 : vector<8x288xf32>
    %c0_6 = arith.constant 0 : index
    %c0_7 = arith.constant 0 : index
    %10 = vector.load %arg5[%c0_6, %c0_7] : memref<8x1xf32, #tpu.memory_space<vmem>>, vector<8x1xf32>
    %11 = vector.broadcast %10 : vector<8x1xf32> to vector<8x288xf32>
    %12 = arith.addf %9, %11 : vector<8x288xf32>
    %cst_8 = arith.constant 0.000000e+00 : f32
    %13 = vector.broadcast %cst_8 : f32 to vector<8x288xf32>
    %14 = arith.maximumf %12, %13 : vector<8x288xf32>
    %c0_9 = arith.constant 0 : index
    %c0_10 = arith.constant 0 : index
    %c0_11 = arith.constant 0 : index
    %15 = vector.load %arg6[%c0_9, %c0_10, %c0_11] : memref<1x8x288xf32, #tpu.memory_space<vmem>>, vector<1x8x288xf32>
    %16 = vector.shape_cast %15 : vector<1x8x288xf32> to vector<8x288xf32>
    %17 = vector.shape_cast %14 : vector<8x288xf32> to vector<1x8x288xf32>
    tpu.vector_store %arg6[%c0_9, %c0_10, %c0_11], %17 {strides = array<i32>} : memref<1x8x288xf32, #tpu.memory_space<vmem>>, vector<1x8x288xf32>,
    return
  }
  func.func @transform_0(%arg0: i32, %arg1: i32) -> (i32, i32, i32) {
    %c0_i32 = arith.constant 0 : i32
    %c0_i32_0 = arith.constant 0 : i32
    %c0_i32_1 = arith.constant 0 : i32
    return %arg0, %c0_i32, %c0_i32_0 : i32, i32, i32
  }
  func.func @transform_1(%arg0: i32, %arg1: i32) -> (i32, i32) {
    %c0_i32 = arith.constant 0 : i32
    %c0_i32_0 = arith.constant 0 : i32
    return %arg1, %c0_i32 : i32, i32
  }
  func.func @transform_2(%arg0: i32, %arg1: i32) -> (i32, i32) {
    %c0_i32 = arith.constant 0 : i32
    %c0_i32_0 = arith.constant 0 : i32
    return %arg1, %c0_i32 : i32, i32
  }
  func.func @transform_3(%arg0: i32, %arg1: i32) -> (i32, i32) {
    %c0_i32 = arith.constant 0 : i32
    %c0_i32_0 = arith.constant 0 : i32
    return %arg1, %c0_i32 : i32, i32
  }
  func.func @transform_4(%arg0: i32, %arg1: i32) -> (i32, i32, i32) {
    %c0_i32 = arith.constant 0 : i32
    %c0_i32_0 = arith.constant 0 : i32
    return %arg0, %arg1, %c0_i32 : i32, i32, i32
  }
}

</mosaic_0001>

<llo_original>
// kernel: tpu_custom_call.1
$region0: #{tpu_custom_call.1}
  #allocation0 [shape = 'u32[]', space=smem, size = 0x4, offset = 0x4, fixed_abs, tag = 'smem constant byte address 0x4 - core index']
  #allocation1 [shape = 'u32[144,128]{1,0:T(1,128)}', space=vmem, size = 0x12000, scoped, tag = 'internal scratch']
  #allocation2 [shape = 'f32[36,288]{1,0:T(8,128)}', space=vmem, size = 0xf000, scoped, tag = 'scratch operand']
  %s0 = inlined_call_operand.hbm [shape: f32[2,4,342], index: 0, kind: input, shape index: {}]
  %s1 = inlined_call_operand.vmem [shape: bf16[8,36], index: 1, kind: input, shape index: {}]
  %s2 = inlined_call_operand.vmem [shape: f32[8,1], index: 2, kind: input, shape index: {}]
  %s3 = inlined_call_operand.vmem [shape: f32[8,1], index: 3, kind: input, shape index: {}]
  %s4 = inlined_call_operand.hbm [shape: f32[2,8,288], index: 4, kind: output, shape index: {}]
  %s5 = sld [smem:[#allocation0]]
  $region57: #{tpu_custom_call.1} parent=0
    _
  %s7 = ssub.s32 1, %s5
  %s8 = scalar_select 0, %s7, %s5
  $region1: #{tpu_custom_call.1} parent=0
    #allocation3 [shape = 'u8[12288]{0}', space=vmem, size = 0x3000, scoped, tag = 'input window, operand 0']
    #allocation4 [shape = 's32[2]{0}', space=sflag, size = 0x8, scoped, tag = 'scoped memory for tpu_custom_call.1']
    #allocation5 [shape = 's32[2]{0}', space=sflag, size = 0x8, scoped, tag = 'scoped memory for tpu_custom_call.1']
    #allocation6 [shape = 'u8[24576]{0}', space=vmem, size = 0x6000, scoped, tag = 'output window, operand 0']
    %9 = vsyncpa [#allocation4], 0
    %s10 = scalar_lea.sflag [#allocation4], 1
    %11 = vsyncpa %s10, 0
    %12 = vsyncpa [#allocation5], 0
    %s13 = scalar_lea.sflag [#allocation5], 1
    %14 = vsyncpa %s13, 0
    loop: start=0, step=1, limit=4
    $region2: #{tpu_custom_call.1} parent=1 // loop_pre_header
      _
    $region3: #{tpu_custom_call.1} parent=1 // loop_header
      %s16 = sphi 0, %s20
      %p17 = scmp.ge.s32.totalorder %s16, 4
      %s23 = sphi 0, %s35
      %s24 = sphi 0, %s31
      %s25 = sphi 0, %s23
      %s26 = sphi 0, %s24
      %s27 = sphi 0, %s25
      %s28 = sphi 0, %s26
      %s38 = sphi 0, %s40
      %s41 = sphi 0, %s38
      %s42 = sphi 0, %s41
      %s58 = sphi 0, %s42
      %s64 = sphi 0, %s66
      %s67 = sphi 0, %s64
      %s68 = sphi 0, %s67
      %s84 = sphi 0, %s68
      %s90 = sphi 0, %s92
      %s93 = sphi 0, %s90
      %s94 = sphi 0, %s93
      %s110 = sphi 0, %s94
      %s116 = sphi 0, %s118
      %s119 = sphi 0, %s116
      %s120 = sphi 0, %s119
      %s136 = sphi 0, %s120
      %s144 = sphi 0, %s146
      %s147 = sphi 0, %s144
      %s148 = sphi 0, %s147
      %s164 = sphi 0, %s148
    $region4: #{tpu_custom_call.1} parent=1 // loop_header_branch
      %19 = sbr.rel (%p17) target = $region8
    $region5: #{tpu_custom_call.1} parent=1 // loop_body
      %s21 = ssub.s32 %s16, 1
      %s22 = ssub.s32 %s16, 2
      %s29 = sadd.s32 1, %s24
      %p30 = scmp.ge.s32.totalorder %s29, 1
      %s31 = scalar_select %p30, 0, %s29
      %s32 = sadd.s32 1, %s23
      %s33 = scalar_select %p30, %s32, %s23
      %p34 = scmp.ge.s32.totalorder %s33, 2
      %s35 = scalar_select %p34, 0, %s33
      %s36 = ssub.s32 %s23, %s35
      %p37 = scmp.eq.s32.totalorder %s36, 0
      %s39 = sadd.s32 %s38, 1
      %s40 = scalar_select %p37, %s38, %s39
      %p43 = pneg %p37
      %p44 = scmp.eq.s32.totalorder %s16, 1
      %p45 = por %p43, %p44
      %p46 = scmp.ne.s32.totalorder %s38, %s41
      %p47 = scmp.eq.s32.totalorder %s16, 0
      %p48 = por %p46, %p47
      %p49 = scmp.ne.s32.totalorder %s38, %s41
      %p50 = scmp.eq.s32.totalorder %s21, 1
      %p51 = por %p49, %p50
      %p52 = scmp.ne.s32.totalorder %s41, %s42
      %p53 = scmp.eq.s32.totalorder %s21, 0
      %p54 = por %p52, %p53
      %p55 = scmp.ne.s32.totalorder %s41, %s42
      %p56 = scmp.eq.s32.totalorder %s22, 1
      %p57 = por %p55, %p56
      %p59 = scmp.ne.s32.totalorder %s42, %s58
      %p60 = scmp.eq.s32.totalorder %s22, 0
      %p61 = por %p59, %p60
      %s62 = ssub.s32 %s24, %s31
      %p63 = scmp.eq.s32.totalorder %s62, 0
      %s65 = sadd.s32 %s64, 1
      %s66 = scalar_select %p63, %s64, %s65
      %p69 = pneg %p63
      %p70 = scmp.eq.s32.totalorder %s16, 1
      %p71 = por %p69, %p70
      %p72 = scmp.ne.s32.totalorder %s64, %s67
      %p73 = scmp.eq.s32.totalorder %s16, 0
      %p74 = por %p72, %p73
      %p75 = scmp.ne.s32.totalorder %s64, %s67
      %p76 = scmp.eq.s32.totalorder %s21, 1
      %p77 = por %p75, %p76
      %p78 = scmp.ne.s32.totalorder %s67, %s68
      %p79 = scmp.eq.s32.totalorder %s21, 0
      %p80 = por %p78, %p79
      %p81 = scmp.ne.s32.totalorder %s67, %s68
      %p82 = scmp.eq.s32.totalorder %s22, 1
      %p83 = por %p81, %p82
      %p85 = scmp.ne.s32.totalorder %s68, %s84
      %p86 = scmp.eq.s32.totalorder %s22, 0
      %p87 = por %p85, %p86
      %s88 = ssub.s32 %s24, %s31
      %p89 = scmp.eq.s32.totalorder %s88, 0
      %s91 = sadd.s32 %s90, 1
      %s92 = scalar_select %p89, %s90, %s91
      %p95 = pneg %p89
      %p96 = scmp.eq.s32.totalorder %s16, 1
      %p97 = por %p95, %p96
      %p98 = scmp.ne.s32.totalorder %s90, %s93
      %p99 = scmp.eq.s32.totalorder %s16, 0
      %p100 = por %p98, %p99
      %p101 = scmp.ne.s32.totalorder %s90, %s93
      %p102 = scmp.eq.s32.totalorder %s21, 1
      %p103 = por %p101, %p102
      %p104 = scmp.ne.s32.totalorder %s93, %s94
      %p105 = scmp.eq.s32.totalorder %s21, 0
      %p106 = por %p104, %p105
      %p107 = scmp.ne.s32.totalorder %s93, %s94
      %p108 = scmp.eq.s32.totalorder %s22, 1
      %p109 = por %p107, %p108
      %p111 = scmp.ne.s32.totalorder %s94, %s110
      %p112 = scmp.eq.s32.totalorder %s22, 0
      %p113 = por %p111, %p112
      %s114 = ssub.s32 %s24, %s31
      %p115 = scmp.eq.s32.totalorder %s114, 0
      %s117 = sadd.s32 %s116, 1
      %s118 = scalar_select %p115, %s116, %s117
      %p121 = pneg %p115
      %p122 = scmp.eq.s32.totalorder %s16, 1
      %p123 = por %p121, %p122
      %p124 = scmp.ne.s32.totalorder %s116, %s119
      %p125 = scmp.eq.s32.totalorder %s16, 0
      %p126 = por %p124, %p125
      %p127 = scmp.ne.s32.totalorder %s116, %s119
      %p128 = scmp.eq.s32.totalorder %s21, 1
      %p129 = por %p127, %p128
      %p130 = scmp.ne.s32.totalorder %s119, %s120
      %p131 = scmp.eq.s32.totalorder %s21, 0
      %p132 = por %p130, %p131
      %p133 = scmp.ne.s32.totalorder %s119, %s120
      %p134 = scmp.eq.s32.totalorder %s22, 1
      %p135 = por %p133, %p134
      %p137 = scmp.ne.s32.totalorder %s120, %s136
      %p138 = scmp.eq.s32.totalorder %s22, 0
      %p139 = por %p137, %p138
      %s140 = ssub.s32 %s23, %s35
      %s141 = ssub.s32 %s24, %s31
      %s142 = sor.u32 %s140, %s141
      %p143 = scmp.eq.s32.totalorder %s142, 0
      %s145 = sadd.s32 %s144, 1
      %s146 = scalar_select %p143, %s144, %s145
      %p149 = pneg %p143
      %p150 = scmp.eq.s32.totalorder %s16, 1
      %p151 = por %p149, %p150
      %p152 = scmp.ne.s32.totalorder %s144, %s147
      %p153 = scmp.eq.s32.totalorder %s16, 0
      %p154 = por %p152, %p153
      %p155 = scmp.ne.s32.totalorder %s144, %s147
      %p156 = scmp.eq.s32.totalorder %s21, 1
      %p157 = por %p155, %p156
      %p158 = scmp.ne.s32.totalorder %s147, %s148
      %p159 = scmp.eq.s32.totalorder %s21, 0
      %p160 = por %p158, %p159
      %p161 = scmp.ne.s32.totalorder %s147, %s148
      %p162 = scmp.eq.s32.totalorder %s22, 1
      %p163 = por %p161, %p162
      %p165 = scmp.ne.s32.totalorder %s148, %s164
      %p166 = scmp.eq.s32.totalorder %s22, 0
      %p167 = por %p165, %p166
      %p168 = scmp.le.s32.totalorder 1, %s16
      %p169 = scmp.lt.s32.totalorder %s16, 3
      %p170 = pnand %p168, %p169
      %p171 = pneg %p170
      // Predicated region
      $region9: #{tpu_custom_call.1} parent=5 // pred_check
        _
      $region10: #{tpu_custom_call.1} parent=5 // pred_check_branch
        %173 = sbr.rel (%p170) target = $region12
      $region11: #{tpu_custom_call.1} parent=5 // pred_region
        %s174 = ssub.s32 %s16, 1
        // Predicated region
        $region13: #{tpu_custom_call.1} parent=11 // pred_check
          %p175 = pneg %p80
        $region14: #{tpu_custom_call.1} parent=11 // pred_check_branch
          %177 = sbr.rel (%p175) target = $region16
        $region15: #{tpu_custom_call.1} parent=11 // pred_region
          %p178 = scmp.lt.s32.totalorder %s26, 0
          %s179 = scalar_select %p178, %s26, 0
          %s180 = smul.addr %s179, 4
          %s181 = scalar_lea.vmem %s1, %s180
        $region16: #{tpu_custom_call.1} parent=11 // pred_fallthru
          _
        // Predicated region
        $region17: #{tpu_custom_call.1} parent=11 // pred_check
          %p182 = pneg %p106
        $region18: #{tpu_custom_call.1} parent=11 // pred_check_branch
          %184 = sbr.rel (%p182) target = $region20
        $region19: #{tpu_custom_call.1} parent=11 // pred_region
          %p185 = scmp.lt.s32.totalorder %s26, 0
          %s186 = scalar_select %p185, %s26, 0
          %s187 = smul.addr %s186, 8
          %s188 = scalar_lea.vmem %s2, %s187
        $region20: #{tpu_custom_call.1} parent=11 // pred_fallthru
          _
        // Predicated region
        $region21: #{tpu_custom_call.1} parent=11 // pred_check
          %p189 = pneg %p132
        $region22: #{tpu_custom_call.1} parent=11 // pred_check_branch
          %191 = sbr.rel (%p189) target = $region24
        $region23: #{tpu_custom_call.1} parent=11 // pred_region
          %p192 = scmp.lt.s32.totalorder %s26, 0
          %s193 = scalar_select %p192, %s26, 0
          %s194 = smul.addr %s193, 8
          %s195 = scalar_lea.vmem %s3, %s194
        $region24: #{tpu_custom_call.1} parent=11 // pred_fallthru
          _
      $region12: #{tpu_custom_call.1} parent=5 // pred_fallthru
        _
      %p196 = scmp.lt.s32.totalorder %s16, 2
      // Predicated region
      $region25: #{tpu_custom_call.1} parent=5 // pred_check
        %p197 = pneg %p196
      $region26: #{tpu_custom_call.1} parent=5 // pred_check_branch
        %199 = sbr.rel (%p197) target = $region28
      $region27: #{tpu_custom_call.1} parent=5 // pred_region
        // Predicated region
        $region29: #{tpu_custom_call.1} parent=27 // pred_check
          %p200 = pneg %p48
        $region30: #{tpu_custom_call.1} parent=27 // pred_check_branch
          %202 = sbr.rel (%p200) target = $region32
        $region31: #{tpu_custom_call.1} parent=27 // pred_region
          %s203 = sand.u32 %s38, 1
          %s204 = scalar_lea.sflag [#allocation4], %s203
          %s205 = sand.u32 %s38, 1
          %s206 = smul.addr %s205, 12
          %s207 = scalar_lea.vmem [#allocation3], %s206
          %s209 = ssub.s32 192, 192
          %210 = vsyncadd %s204, %s209
          %s211 = smul.addr %s23, 3
          %s212 = smul.addr %s211, 64
          %s213 = scalar_lea.hbm %s0, %s212
          %s215 = sshll.u32 %s207, 4
          %s216 = int_to_ptr.vmem [resolvable:$true] %s215
          %218 = dma.hbm_to_vmem [thread:$0]  %s213, 192, %s216, %s204
        $region32: #{tpu_custom_call.1} parent=27 // pred_fallthru
          _
      $region28: #{tpu_custom_call.1} parent=5 // pred_fallthru
        _
      %p219 = scmp.le.s32.totalorder 1, %s16
      %p220 = scmp.lt.s32.totalorder %s16, 3
      %p221 = pnand %p219, %p220
      %p222 = pneg %p221
      // Predicated region
      $region33: #{tpu_custom_call.1} parent=5 // pred_check
        _
      $region34: #{tpu_custom_call.1} parent=5 // pred_check_branch
        %224 = sbr.rel (%p221) target = $region36
      $region35: #{tpu_custom_call.1} parent=5 // pred_region
        %s225 = ssub.s32 %s16, 1
        %s226 = sand.u32 %s41, 1
        %s227 = scalar_lea.sflag [#allocation4], %s226
        %s228 = sand.u32 %s41, 1
        %s229 = smul.addr %s228, 12
        %s230 = scalar_lea.vmem [#allocation3], %s229
        // Predicated region
        $region37: #{tpu_custom_call.1} parent=35 // pred_check
          %p231 = pneg %p54
        $region38: #{tpu_custom_call.1} parent=35 // pred_check_branch
          %233 = sbr.rel (%p231) target = $region40
        $region39: #{tpu_custom_call.1} parent=35 // pred_region
          %234 = dma.done %s227, 192
        $region40: #{tpu_custom_call.1} parent=35 // pred_fallthru
          _
        %s235 = sand.u32 %s41, 1
        %s236 = scalar_lea.sflag [#allocation4], %s235
        %s237 = sand.u32 %s41, 1
        %s238 = smul.addr %s237, 12
        %s239 = scalar_lea.vmem [#allocation3], %s238
        %p240 = pneg %p54
        %p241 = pneg %p51
        %p242 = scmp.lt.s32.totalorder %s26, 0
        %s243 = scalar_select %p242, %s26, 0
        %s244 = smul.addr %s243, 4
        %s245 = scalar_lea.vmem %s1, %s244
        %p246 = pneg %p80
        %p247 = pneg %p77
        %p248 = scmp.lt.s32.totalorder %s26, 0
        %s249 = scalar_select %p248, %s26, 0
        %s250 = smul.addr %s249, 8
        %s251 = scalar_lea.vmem %s2, %s250
        %p252 = pneg %p106
        %p253 = pneg %p103
        %p254 = scmp.lt.s32.totalorder %s26, 0
        %s255 = scalar_select %p254, %s26, 0
        %s256 = smul.addr %s255, 8
        %s257 = scalar_lea.vmem %s3, %s256
        %p258 = pneg %p132
        %p259 = pneg %p129
        %p260 = pneg %p160
        %p261 = pneg %p157
        %s262 = sand.u32 %s147, 1
        %s263 = scalar_lea.sflag [#allocation5], %s262
        %s264 = sand.u32 %s147, 1
        %s265 = smul.addr %s264, 24
        %s266 = scalar_lea.vmem [#allocation6], %s265
        %p267 = scmp.lt.s32.totalorder %s26, 0
        %s268 = scalar_select %p267, %s26, 0
        %s269 = smul.addr %s268, 4
        %s270 = scalar_lea.vmem %s1, %s269
        %p271 = scmp.lt.s32.totalorder %s26, 0
        %s272 = scalar_select %p271, %s26, 0
        %s273 = smul.addr %s272, 8
        %s274 = scalar_lea.vmem %s2, %s273
        %p275 = scmp.lt.s32.totalorder %s26, 0
        %s276 = scalar_select %p275, %s26, 0
        %s277 = smul.addr %s276, 8
        %s278 = scalar_lea.vmem %s3, %s277
        %p280 = scmp.eq.s32.totalorder %s26, 0
        // Predicated region
        $region41: #{tpu_custom_call.1} parent=35 // pred_check
          %p281 = pneg %p280
        $region42: #{tpu_custom_call.1} parent=35 // pred_check_branch
          %283 = sbr.rel (%p281) target = $region44
        $region43: #{tpu_custom_call.1} parent=35 // pred_region
          %v284 = vld [vmem:[%s230] sm:$0xff]
          %v285 = vld [vmem:[%s230 + $0x8] sm:$0xf]
          %v287 = vcombine.high %v284, %v284
          %289 = vst [vmem:[#allocation2] sm:$0xf] %v284
          %290 = vst [vmem:[#allocation2 + $0x8] sm:$0xf] %v287
          %vm291 = vcmask 257024
          %292 = vst.msk [vmem:[#allocation2 + $0x10] sm:$0xf] %vm291, %v285
          %v293 = vld [vmem:[%s230] sm:$0xff]
          %v294 = vld [vmem:[%s230 + $0x8] sm:$0xf]
          %v297 = vcombine.low %v293, %v293
          %v298 = vcombine.low %v294, %v294
          %299 = vrot.lane.b32.xlu0 %v297, 127
          %v300 = vpop.permute.xlu0 %299
          %301 = vrot.lane.b32.xlu0 %v293, 127
          %v302 = vpop.permute.xlu0 %301
          %303 = vrot.lane.b32.xlu0 %v298, 127
          %v304 = vpop.permute.xlu0 %303
          %vm305 = vcmask 1039360
          %v306 = vsel %vm305, %v300, %v302
          %v307 = vsel %vm305, %v302, %v304
          %311 = vst [vmem:[#allocation2] sm:$0xf0] %v306
          %312 = vst [vmem:[#allocation2 + $0x8] sm:$0xf0] %v307
          %vm313 = vcmask 261124
          %314 = vst.msk [vmem:[#allocation2 + $0x10] sm:$0xf0] %vm313, %v304
          %v315 = vld [vmem:[%s230] sm:$0xff]
          %v316 = vld [vmem:[%s230 + $0x8] sm:$0xf]
          %v319 = vcombine.high %v315, %v315
          %320 = vrot.lane.b32.xlu0 %v315, 126
          %v321 = vpop.permute.xlu0 %320
          %322 = vrot.lane.b32.xlu0 %v319, 126
          %v323 = vpop.permute.xlu0 %322
          %324 = vrot.lane.b32.xlu0 %v316, 126
          %v325 = vpop.permute.xlu0 %324
          %vm326 = vcmask 1031168
          %v327 = vsel %vm326, %v321, %v323
          %v328 = vsel %vm326, %v323, %v325
          %332 = vst [vmem:[#allocation2 + $0x18] sm:$0xf] %v327
          %333 = vst [vmem:[#allocation2 + $0x20] sm:$0xf] %v328
          %334 = vst.msk [vmem:[#allocation2 + $0x28] sm:$0xf] %vm291, %v325
          %v335 = vld [vmem:[%s230] sm:$0xff]
          %v336 = vld [vmem:[%s230 + $0x8] sm:$0xf]
          %v339 = vcombine.low %v335, %v335
          %v340 = vcombine.low %v336, %v336
          %341 = vrot.lane.b32.xlu0 %v339, 110
          %v342 = vpop.permute.xlu0 %341
          %343 = vrot.lane.b32.xlu0 %v335, 110
          %v344 = vpop.permute.xlu0 %343
          %345 = vrot.lane.b32.xlu0 %v340, 110
          %v346 = vpop.permute.xlu0 %345
          %vm347 = vcmask 900096
          %v348 = vsel %vm347, %v342, %v344
          %v349 = vsel %vm347, %v344, %v346
          %353 = vst [vmem:[#allocation2 + $0x18] sm:$0xf0] %v348
          %354 = vst [vmem:[#allocation2 + $0x20] sm:$0xf0] %v349
          %355 = vst.msk [vmem:[#allocation2 + $0x28] sm:$0xf0] %vm313, %v346
          %v356 = vld [vmem:[%s230] sm:$0xff]
          %v357 = vld [vmem:[%s230 + $0x8] sm:$0xf]
          %v360 = vcombine.high %v356, %v356
          %361 = vrot.lane.b32.xlu0 %v356, 109
          %v362 = vpop.permute.xlu0 %361
          %363 = vrot.lane.b32.xlu0 %v360, 109
          %v364 = vpop.permute.xlu0 %363
          %365 = vrot.lane.b32.xlu0 %v357, 109
          %v366 = vpop.permute.xlu0 %365
          %vm367 = vcmask 891904
          %v368 = vsel %vm367, %v362, %v364
          %v369 = vsel %vm367, %v364, %v366
          %373 = vst [vmem:[#allocation2 + $0x30] sm:$0xf] %v368
          %374 = vst [vmem:[#allocation2 + $0x38] sm:$0xf] %v369
          %375 = vst.msk [vmem:[#allocation2 + $0x40] sm:$0xf] %vm291, %v366
          %v376 = vld [vmem:[%s230] sm:$0xff]
          %v377 = vld [vmem:[%s230 + $0x8] sm:$0xf]
          %v380 = vcombine.low %v376, %v376
          %v381 = vcombine.low %v377, %v377
          %382 = vrot.lane.b32.xlu0 %v380, 108
          %v383 = vpop.permute.xlu0 %382
          %384 = vrot.lane.b32.xlu0 %v376, 108
          %v385 = vpop.permute.xlu0 %384
          %386 = vrot.lane.b32.xlu0 %v381, 108
          %v387 = vpop.permute.xlu0 %386
          %vm388 = vcmask 883712
          %v389 = vsel %vm388, %v383, %v385
          %v390 = vsel %vm388, %v385, %v387
          %394 = vst [vmem:[#allocation2 + $0x30] sm:$0xf0] %v389
          %395 = vst [vmem:[#allocation2 + $0x38] sm:$0xf0] %v390
          %396 = vst.msk [vmem:[#allocation2 + $0x40] sm:$0xf0] %vm313, %v387
          %v397 = vld [vmem:[%s230] sm:$0xff]
          %v398 = vld [vmem:[%s230 + $0x8] sm:$0xf]
          %v401 = vcombine.high %v397, %v397
          %402 = vrot.lane.b32.xlu0 %v397, 92
          %v403 = vpop.permute.xlu0 %402
          %404 = vrot.lane.b32.xlu0 %v401, 92
          %v405 = vpop.permute.xlu0 %404
          %406 = vrot.lane.b32.xlu0 %v398, 92
          %v407 = vpop.permute.xlu0 %406
          %vm408 = vcmask 752640
          %v409 = vsel %vm408, %v403, %v405
          %v410 = vsel %vm408, %v405, %v407
          %414 = vst [vmem:[#allocation2 + $0x48] sm:$0xf] %v409
          %415 = vst [vmem:[#allocation2 + $0x50] sm:$0xf] %v410
          %416 = vst.msk [vmem:[#allocation2 + $0x58] sm:$0xf] %vm291, %v407
          %v417 = vld [vmem:[%s230] sm:$0xff]
          %v418 = vld [vmem:[%s230 + $0x8] sm:$0xf]
          %v421 = vcombine.low %v417, %v417
          %v422 = vcombine.low %v418, %v418
          %423 = vrot.lane.b32.xlu0 %v421, 91
          %v424 = vpop.permute.xlu0 %423
          %425 = vrot.lane.b32.xlu0 %v417, 91
          %v426 = vpop.permute.xlu0 %425
          %427 = vrot.lane.b32.xlu0 %v422, 91
          %v428 = vpop.permute.xlu0 %427
          %vm429 = vcmask 744448
          %v430 = vsel %vm429, %v424, %v426
          %v431 = vsel %vm429, %v426, %v428
          %435 = vst [vmem:[#allocation2 + $0x48] sm:$0xf0] %v430
          %436 = vst [vmem:[#allocation2 + $0x50] sm:$0xf0] %v431
          %437 = vst.msk [vmem:[#allocation2 + $0x58] sm:$0xf0] %vm313, %v428
          %v438 = vld [vmem:[%s230] sm:$0xff]
          %v439 = vld [vmem:[%s230 + $0x8] sm:$0xf]
          %v442 = vcombine.high %v438, %v438
          %443 = vrot.lane.b32.xlu0 %v438, 90
          %v444 = vpop.permute.xlu0 %443
          %445 = vrot.lane.b32.xlu0 %v442, 90
          %v446 = vpop.permute.xlu0 %445
          %447 = vrot.lane.b32.xlu0 %v439, 90
          %v448 = vpop.permute.xlu0 %447
          %vm449 = vcmask 736256
          %v450 = vsel %vm449, %v444, %v446
          %v451 = vsel %vm449, %v446, %v448
          %455 = vst [vmem:[#allocation2 + $0x60] sm:$0xf] %v450
          %456 = vst [vmem:[#allocation2 + $0x68] sm:$0xf] %v451
          %457 = vst.msk [vmem:[#allocation2 + $0x70] sm:$0xf] %vm291, %v448
        $region44: #{tpu_custom_call.1} parent=35 // pred_fallthru
          _
        %v458 = vld [vmem:[#allocation2] sm:$0xff]
        %v459 = vld [vmem:[#allocation2 + $0x8] sm:$0xff]
        %v460 = vld [vmem:[#allocation2 + $0x10] sm:$0xff]
        %v461 = vld [vmem:[#allocation2 + $0x18] sm:$0xff]
        %v462 = vld [vmem:[#allocation2 + $0x20] sm:$0xff]
        %v463 = vld [vmem:[#allocation2 + $0x28] sm:$0xff]
        %v464 = vld [vmem:[#allocation2 + $0x30] sm:$0xff]
        %v465 = vld [vmem:[#allocation2 + $0x38] sm:$0xff]
        %v466 = vld [vmem:[#allocation2 + $0x40] sm:$0xff]
        %v467 = vld [vmem:[#allocation2 + $0x48] sm:$0xff]
        %v468 = vld [vmem:[#allocation2 + $0x50] sm:$0xff]
        %v469 = vld [vmem:[#allocation2 + $0x58] sm:$0xff]
        %v470 = vld [vmem:[#allocation2 + $0x60] sm:$0xf]
        %v471 = vld [vmem:[#allocation2 + $0x68] sm:$0xf]
        %v472 = vld [vmem:[#allocation2 + $0x70] sm:$0xf]
        %v473 = vpack.c.bf16 %v461, %v458
        %v474 = vpack.c.bf16 %v462, %v459
        %v475 = vpack.c.bf16 %v463, %v460
        %v476 = vpack.c.bf16 %v467, %v464
        %v477 = vpack.c.bf16 %v468, %v465
        %v478 = vpack.c.bf16 %v469, %v466
        %v479 = vpack.c.bf16 %v470, %v470
        %v480 = vpack.c.bf16 %v471, %v471
        %v481 = vpack.c.bf16 %v472, %v472
        %v482 = vld [vmem:[%s270] sm:$0xf]
        %vm483 = vcmask 293888
        %v485 = vsel %vm483, %v482, 0
        %vm487 = vcmask 1041408
        %v489 = vsel %vm487, %v479, 0
        %v492 = vsel %vm487, %v480, 0
        %v495 = vsel %vm487, %v481, 0
        %497 = vmatprep.subr.bf16.mxu0 0
        %498 = vmatpush1.bf16.msra.mxu0 0
        %499 = vmatprep.subr.bf16.mxu0 0
        %500 = vmatpush1.bf16.msra.mxu0 0
        %501 = vmatprep.subr.bf16.mxu0 0
        %502 = vmatpush1.bf16.msra.mxu0 0
        %503 = vmatprep.subr.bf16.mxu0 0
        %504 = vmatpush1.bf16.msra.mxu0 0
        %505 = vmatprep.subr.bf16.mxu0 0
        %506 = vmatpush1.bf16.msra.mxu0 0
        %507 = vmatprep.subr.bf16.mxu0 %v492
        %508 = vmatpush1.bf16.msra.mxu0 %v489
        %509 = vmatprep.subr.bf16.mxu0 %v477
        %510 = vmatpush1.bf16.msra.mxu0 %v476
        %511 = vmatprep.subr.bf16.mxu0 %v474
        %512 = vmatpush1.bf16.msra.mxu0 %v473
        %513 = vmatprep.subr.bf16.mxu0 0
        %514 = vmatpush2.bf16.msra.mxu0 0
        %515 = vmatprep.subr.bf16.mxu0 0
        %516 = vmatpush2.bf16.msra.mxu0 0
        %517 = vmatprep.subr.bf16.mxu0 0
        %518 = vmatpush2.bf16.msra.mxu0 0
        %519 = vmatprep.subr.bf16.mxu0 0
        %520 = vmatpush2.bf16.msra.mxu0 0
        %521 = vmatprep.subr.bf16.mxu0 0
        %522 = vmatpush2.bf16.msra.mxu0 0
        %523 = vmatprep.subr.bf16.mxu0 0
        %524 = vmatpush2.bf16.msra.mxu0 0
        %525 = vmatprep.subr.bf16.mxu0 0
        %526 = vmatpush2.bf16.msra.mxu0 0
        %527 = vmatprep.subr.bf16.mxu0 0
        %528 = vmatpush2.bf16.msra.mxu0 0
        %529 = vmatprep.mubr.bf16.mxu0 0
        %530 = vmatmul.mubr.bf16.gmra.mxu0 %v485
        %v531 = vpop.f32.mrf.mxu0
        %v532 = vadd.f32 0.0, %v531
        %v533 = vpop.f32.mrf.mxu0
        %v534 = vadd.f32 0.0, %v533
        %v535 = vpop.f32.mrf.mxu0
        %v536 = vpop.f32.mrf.mxu0
        %537 = vdwg.mxu0
        %538 = vmatprep.subr.bf16.mxu0 0
        %539 = vmatpush1.bf16.msra.mxu0 0
        %540 = vmatprep.subr.bf16.mxu0 0
        %541 = vmatpush1.bf16.msra.mxu0 0
        %542 = vmatprep.subr.bf16.mxu0 0
        %543 = vmatpush1.bf16.msra.mxu0 0
        %544 = vmatprep.subr.bf16.mxu0 0
        %545 = vmatpush1.bf16.msra.mxu0 0
        %546 = vmatprep.subr.bf16.mxu0 0
        %547 = vmatpush1.bf16.msra.mxu0 0
        %548 = vmatprep.subr.bf16.mxu0 0
        %549 = vmatpush1.bf16.msra.mxu0 %v495
        %550 = vmatprep.subr.bf16.mxu0 0
        %551 = vmatpush1.bf16.msra.mxu0 %v478
        %552 = vmatprep.subr.bf16.mxu0 0
        %553 = vmatpush1.bf16.msra.mxu0 %v475
        %554 = vmatprep.subr.bf16.mxu0 0
        %555 = vmatpush2.bf16.msra.mxu0 0
        %556 = vmatprep.subr.bf16.mxu0 0
        %557 = vmatpush2.bf16.msra.mxu0 0
        %558 = vmatprep.subr.bf16.mxu0 0
        %559 = vmatpush2.bf16.msra.mxu0 0
        %560 = vmatprep.subr.bf16.mxu0 0
        %561 = vmatpush2.bf16.msra.mxu0 0
        %562 = vmatprep.subr.bf16.mxu0 0
        %563 = vmatpush2.bf16.msra.mxu0 0
        %564 = vmatprep.subr.bf16.mxu0 0
        %565 = vmatpush2.bf16.msra.mxu0 0
        %566 = vmatprep.subr.bf16.mxu0 0
        %567 = vmatpush2.bf16.msra.mxu0 0
        %568 = vmatprep.subr.bf16.mxu0 0
        %569 = vmatpush2.bf16.msra.mxu0 0
        %570 = vmatprep.mubr.bf16.mxu0 0
        %571 = vmatmul.mubr.bf16.gmra.mxu0 %v485
        %v572 = vpop.f32.mrf.mxu0
        %v573 = vadd.f32 0.0, %v572
        %v574 = vpop.f32.mrf.mxu0
        %v575 = vpop.f32.mrf.mxu0
        %v576 = vpop.f32.mrf.mxu0
        %577 = vdwg.mxu0
        %v578 = vld [vmem:[%s274] sm:$0xff]
        %580 = vset.pattern.permute.xlu0 0
        %581 = vperm.xlu0 %580, %v578
        %v582 = vpop.permute.xlu0 %581
        %v584 = vmul.f32 %v532, %v582
        %v585 = vmul.f32 %v534, %v582
        %v586 = vmul.f32 %v573, %v582
        %v587 = vld [vmem:[%s278] sm:$0xff]
        %589 = vset.pattern.permute.xlu0 0
        %590 = vperm.xlu0 %589, %v587
        %v591 = vpop.permute.xlu0 %590
        %v593 = vadd.f32 %v584, %v591
        %v594 = vadd.f32 %v585, %v591
        %v595 = vadd.f32 %v586, %v591
        %v596 = vmax.f32 %v593, 0.0
        %v597 = vmax.f32 %v594, 0.0
        %v598 = vmax.f32 %v595, 0.0
        %599 = vst [vmem:[%s266] sm:$0xff] %v596
        %600 = vst [vmem:[%s266 + $0x8] sm:$0xff] %v597
        %vm601 = vcmask 261120
        %602 = vst.msk [vmem:[%s266 + $0x10] sm:$0xff] %vm601, %v598
        %s603 = sand.u32 %s147, 1
        %s604 = scalar_lea.sflag [#allocation5], %s603
        %s605 = sand.u32 %s147, 1
        %s606 = smul.addr %s605, 24
        %s607 = scalar_lea.vmem [#allocation6], %s606
        // Predicated region
        $region45: #{tpu_custom_call.1} parent=35 // pred_check
          %p608 = pneg %p157
        $region46: #{tpu_custom_call.1} parent=35 // pred_check_branch
          %610 = sbr.rel (%p608) target = $region48
        $region47: #{tpu_custom_call.1} parent=35 // pred_region
          %s612 = ssub.s32 384, 384
          %613 = vsyncadd %s604, %s612
          %s614 = smul.addr %s26, 3
          %s615 = smul.addr %s25, 3
          %s616 = sadd.s32 %s614, %s615
          %s617 = smul.addr %s616, 128
          %s618 = scalar_lea.hbm %s4, %s617
          %s620 = sshll.u32 %s607, 4
          %s621 = int_to_ptr.vmem [resolvable:$true] %s620
          %623 = dma.vmem_to_hbm [thread:$0]  %s621, 384, %s618, %s604
        $region48: #{tpu_custom_call.1} parent=35 // pred_fallthru
          _
      $region36: #{tpu_custom_call.1} parent=5 // pred_fallthru
        _
      %p624 = scmp.le.s32.totalorder 2, %s16
      // Predicated region
      $region49: #{tpu_custom_call.1} parent=5 // pred_check
        %p625 = pneg %p624
      $region50: #{tpu_custom_call.1} parent=5 // pred_check_branch
        %627 = sbr.rel (%p625) target = $region52
      $region51: #{tpu_custom_call.1} parent=5 // pred_region
        %s628 = ssub.s32 %s16, 2
        // Predicated region
        $region53: #{tpu_custom_call.1} parent=51 // pred_check
          %p629 = pneg %p163
        $region54: #{tpu_custom_call.1} parent=51 // pred_check_branch
          %631 = sbr.rel (%p629) target = $region56
        $region55: #{tpu_custom_call.1} parent=51 // pred_region
          %s632 = sand.u32 %s148, 1
          %s633 = scalar_lea.sflag [#allocation5], %s632
          %s634 = sand.u32 %s148, 1
          %s635 = smul.addr %s634, 24
          %s636 = scalar_lea.vmem [#allocation6], %s635
          %637 = dma.done %s633, 384
        $region56: #{tpu_custom_call.1} parent=51 // pred_fallthru
          _
      $region52: #{tpu_custom_call.1} parent=5 // pred_fallthru
        _
    $region6: #{tpu_custom_call.1} parent=1 // loop_footer
      %s20 = sadd.s32 1, %s16
    $region7: #{tpu_custom_call.1} parent=1 // loop_footer_branch
      %15 = sbr.rel target = $region3
    $region8: #{tpu_custom_call.1} parent=1 // loop_exit
      _
    %638 = vsyncpa [#allocation4], 1
    %s639 = scalar_lea.sflag [#allocation4], 1
    %640 = vsyncpa %s639, 1
    %641 = vsyncpa [#allocation5], 1
    %s642 = scalar_lea.sflag [#allocation5], 1
    %643 = vsyncpa %s642, 1

</llo_original>
